<compile_context>
chip_gen: v5e
topology: v5e:2x2
jax: 0.10.0
libtpu: 0.0.40
codegen_flags: <defaults>
</compile_context>

<pallas_src>
import math
import functools

import jax
import jax.numpy as jnp
from jax.experimental import pallas as pl
from jax.experimental.pallas import tpu as pltpu

D_MODEL = 1
HEADS = 1


def _mha_kernel(params_ref, qkv_ref, o_ref, *, inv_scale):
    """Single gridless invocation, fully vectorized over (batch, query-pos).

    Layout (specialized to d_model == heads == 1, with seq_len N == batch B):
      params_ref : SMEM (6,) f32          = [wq, bq, wk, bk, wv, bv]
      qkv_ref    : VMEM (3, N, B*N) f32
                     [0, j, b*N + i] = query[b, i]   (broadcast down sublanes)
                     [1, j, b*N + i] = key[b, j]     (per-batch lane block)
                     [2, j, b*N + i] = value[b, j]   (same layout as keys)
      o_ref      : VMEM (1, B*N)          context, column c = b*N + i
    Keys j live on sublanes; the flattened (b, i) pair lives on lanes, so the
    whole problem is one vreg-wide pass: projections, one elementwise "outer
    product", one softmax over axis 0, one store.  No MXU (all K == 1).
    """
    # Scalar projection params (d_model = 1 -> nn.Linear is y = w*x + b).
    # Fold the compile-time 1/scale constant into the query projection.
    wq = params_ref[0] * inv_scale
    bq = params_ref[1] * inv_scale
    wk = params_ref[2]
    bk = params_ref[3]
    wv = params_ref[4]
    bv = params_ref[5]

    q_rep = qkv_ref[0].astype(jnp.float32)     # (N, B*N)
    k_rep = qkv_ref[1].astype(jnp.float32)     # (N, B*N)
    v_rep = qkv_ref[2].astype(jnp.float32)     # (N, B*N)

    qh = q_rep * wq + bq                       # projected + pre-scaled queries
    kp = k_rep * wk + bk                       # projected keys
    vp = v_rep * wv + bv                       # projected values

    # scores[j, b*N + i] = q_proj[b, i] * k_proj[b, j] / scale   (pure VPU)
    s = qh * kp                                # (N, B*N)

    # The reference's masked_fill() is not in-place and its result is
    # discarded, so the mask has no effect on the forward output (no-op).

    # Softmax over keys j (axis 0 / sublanes): one max, one exp, two sums.
    m = jnp.max(s, axis=0, keepdims=True)      # (1, B*N)
    e = jnp.exp(s - m)                         # EUP
    denom = jnp.sum(e, axis=0, keepdims=True)  # (1, B*N)
    ctx = jnp.sum(e * vp, axis=0, keepdims=True) / denom   # exact normalize

    o_ref[...] = ctx.astype(o_ref.dtype)       # single lane-dense store


@jax.jit
def _mha_forward(query, key, value, params):
    B, S, D = query.shape
    N = value.shape[0]          # mirrors the PyTorch code: N = value.shape[0]
    assert S == N, "module's .view() only works when seq_len == batch_size"
    assert D == D_MODEL, "kernel specialized to d_model=1"
    inv_scale = 1.0 / math.sqrt(float(D))      # scale = sqrt(d_model)

    wq, bq, wk, bk, wv, bv = params
    # d_model == 1: each Linear is one scalar weight + one scalar bias.
    scalars = jnp.stack([
        wq.reshape(()), bq.reshape(()),
        wk.reshape(()), bk.reshape(()),
        wv.reshape(()), bv.reshape(()),
    ]).astype(jnp.float32)                     # (6,) -> SMEM

    # Layout plumbing: build ONE packed (3, N, B*N) operand so Pallas issues a
    # single input DMA and the kernel needs zero in-kernel relayout.  Under
    # jax.jit all of these reshape/transpose/repeat/stack ops fuse into one
    # producer fusion (one dispatch) feeding the pallas custom call.
    q2 = query.reshape(B, N).astype(jnp.float32)
    k2 = key.reshape(B, N).astype(jnp.float32)
    v2 = value.reshape(B, N).astype(jnp.float32)

    q_rep = jnp.broadcast_to(q2.reshape(1, B * N), (N, B * N))  # [j, b*N+i]=q[b,i]
    k_rep = jnp.repeat(k2.T, N, axis=1)                         # [j, b*N+i]=k[b,j]
    v_rep = jnp.repeat(v2.T, N, axis=1)                         # [j, b*N+i]=v[b,j]
    qkv = jnp.stack([q_rep, k_rep, v_rep])                      # (3, N, B*N)

    kernel = functools.partial(_mha_kernel, inv_scale=inv_scale)

    out_flat = pl.pallas_call(
        kernel,
        out_shape=jax.ShapeDtypeStruct((1, B * N), query.dtype),
        in_specs=[
            pl.BlockSpec(memory_space=pltpu.MemorySpace.SMEM),   # packed scalars
            pl.BlockSpec(memory_space=pltpu.MemorySpace.VMEM),   # packed q/k/v
        ],
        out_specs=pl.BlockSpec(memory_space=pltpu.MemorySpace.VMEM),
    )(scalars, qkv)

    # Column c = b*N + i maps row-major onto (B, N); final d_model axis is 1.
    return out_flat.reshape(B, N, D)


def multi_head_attention(query, key, value, params, mask=None, heads=HEADS):
    """Pallas forward pass matching the PyTorch MultiHeadAttention module."""
    # The reference's masked_fill is not in-place; its result is discarded,
    # so the mask is intentionally a no-op in the forward pass.
    del mask
    assert heads == HEADS, "kernel specialized to heads=1"
    return _mha_forward(query, key, value, params)


def _reference(query, key, value, params, heads=HEADS):
    """Pure-JAX reproduction of the PyTorch forward (for verification)."""
    wq, bq, wk, bk, wv, bv = params
    B, S, D = query.shape
    N = value.shape[0]
    scale = math.sqrt(float(D))
    dh = D // heads

    def proj(x, w, b):
        return x @ w.T + b

    q = proj(query, wq, bq).reshape(B, N, heads, dh).transpose(0, 2, 1, 3)
    k = proj(key, wk, bk).reshape(B, N, heads, dh).transpose(0, 2, 1, 3)
    v = proj(value, wv, bv).reshape(B, N, heads, dh).transpose(0, 2, 1, 3)

    attn = jnp.einsum("bhnd,bhmd->bhnm", q, k) / scale
    attn = jax.nn.softmax(attn, axis=-1)
    ctx = jnp.einsum("bhnm,bhmd->bhnd", attn, v)
    ctx = ctx.transpose(0, 2, 1, 3).reshape(B, N, D)
    return ctx


if __name__ == "__main__":
    # Shapes implied by the module: d_model=1, heads=1, and seq_len must equal
    # batch_size because N = value.shape[0]. Pick B = N = 8.
    B = 8
    N = 8
    D = D_MODEL

    root = jax.random.PRNGKey(0)
    kq, kk, kv, kw = jax.random.split(root, 4)
    query = jax.random.normal(kq, (B, N, D), dtype=jnp.float32)
    key = jax.random.normal(kk, (B, N, D), dtype=jnp.float32)
    value = jax.random.normal(kv, (B, N, D), dtype=jnp.float32)

    # Deterministic params (nn.Linear(1,1) x 3: weight (D,D), bias (D,)).
    pw = jax.random.split(kw, 6)
    params = (
        jax.random.normal(pw[0], (D, D), dtype=jnp.float32) * 0.5,  # wq
        jax.random.normal(pw[1], (D,), dtype=jnp.float32) * 0.1,    # bq
        jax.random.normal(pw[2], (D, D), dtype=jnp.float32) * 0.5,  # wk
        jax.random.normal(pw[3], (D,), dtype=jnp.float32) * 0.1,    # bk
        jax.random.normal(pw[4], (D, D), dtype=jnp.float32) * 0.5,  # wv
        jax.random.normal(pw[5], (D,), dtype=jnp.float32) * 0.1,    # bv
    )

    out = multi_head_attention(query, key, value, params)
    out = jax.block_until_ready(out)

    ref = _reference(query, key, value, params)
    assert out.shape == (B, N, D), out.shape
    # Exact softmax normalization -> tight tolerance.
    assert jnp.allclose(out, ref, atol=1e-5, rtol=1e-5), "mismatch vs reference"

    print("KERNEL_OK")
</pallas_src>

<mosaic_0001>
module attributes {stable_mosaic.version = 11 : i64} {
  func.func @_mha_kernel(%arg0: memref<6xf32, #tpu.memory_space<smem>>, %arg1: memref<3x8x64xf32, #tpu.memory_space<vmem>>, %arg2: memref<1x64xf32, #tpu.memory_space<vmem>>) attributes {dimension_semantics = [], scalar_prefetch = 0 : i64, scratch_operands = 0 : i64, tpu.core_type = #tpu.core_type<tc>} {
    %c0 = arith.constant 0 : index
    %0 = memref.load %arg0[%c0] : memref<6xf32, #tpu.memory_space<smem>>
    %cst = arith.constant 1.000000e+00 : f32
    %1 = arith.mulf %0, %cst : f32
    %c1 = arith.constant 1 : index
    %2 = memref.load %arg0[%c1] : memref<6xf32, #tpu.memory_space<smem>>
    %cst_0 = arith.constant 1.000000e+00 : f32
    %3 = arith.mulf %2, %cst_0 : f32
    %c2 = arith.constant 2 : index
    %4 = memref.load %arg0[%c2] : memref<6xf32, #tpu.memory_space<smem>>
    %c3 = arith.constant 3 : index
    %5 = memref.load %arg0[%c3] : memref<6xf32, #tpu.memory_space<smem>>
    %c4 = arith.constant 4 : index
    %6 = memref.load %arg0[%c4] : memref<6xf32, #tpu.memory_space<smem>>
    %c5 = arith.constant 5 : index
    %7 = memref.load %arg0[%c5] : memref<6xf32, #tpu.memory_space<smem>>
    %c0_1 = arith.constant 0 : index
    %c0_2 = arith.constant 0 : index
    %c0_3 = arith.constant 0 : index
    %8 = vector.load %arg1[%c0_1, %c0_2, %c0_3] : memref<3x8x64xf32, #tpu.memory_space<vmem>>, vector<1x8x64xf32>
    %9 = vector.shape_cast %8 : vector<1x8x64xf32> to vector<8x64xf32>
    %c1_4 = arith.constant 1 : index
    %c0_5 = arith.constant 0 : index
    %c0_6 = arith.constant 0 : index
    %10 = vector.load %arg1[%c1_4, %c0_5, %c0_6] : memref<3x8x64xf32, #tpu.memory_space<vmem>>, vector<1x8x64xf32>
    %11 = vector.shape_cast %10 : vector<1x8x64xf32> to vector<8x64xf32>
    %c2_7 = arith.constant 2 : index
    %c0_8 = arith.constant 0 : index
    %c0_9 = arith.constant 0 : index
    %12 = vector.load %arg1[%c2_7, %c0_8, %c0_9] : memref<3x8x64xf32, #tpu.memory_space<vmem>>, vector<1x8x64xf32>
    %13 = vector.shape_cast %12 : vector<1x8x64xf32> to vector<8x64xf32>
    %14 = vector.broadcast %1 : f32 to vector<8x64xf32>
    %15 = arith.mulf %9, %14 : vector<8x64xf32>
    %16 = vector.broadcast %3 : f32 to vector<8x64xf32>
    %17 = arith.addf %15, %16 : vector<8x64xf32>
    %18 = vector.broadcast %4 : f32 to vector<8x64xf32>
    %19 = arith.mulf %11, %18 : vector<8x64xf32>
    %20 = vector.broadcast %5 : f32 to vector<8x64xf32>
    %21 = arith.addf %19, %20 : vector<8x64xf32>
    %22 = vector.broadcast %6 : f32 to vector<8x64xf32>
    %23 = arith.mulf %13, %22 : vector<8x64xf32>
    %24 = vector.broadcast %7 : f32 to vector<8x64xf32>
    %25 = arith.addf %23, %24 : vector<8x64xf32>
    %26 = arith.mulf %17, %21 : vector<8x64xf32>
    %cst_10 = arith.constant dense<0xFF800000> : vector<64xf32>
    %27 = vector.multi_reduction <maximumf>, %26, %cst_10 [0] : vector<8x64xf32> to vector<64xf32>
    %28 = vector.shape_cast %27 : vector<64xf32> to vector<1x64xf32>
    %29 = vector.broadcast %28 : vector<1x64xf32> to vector<8x64xf32>
    %30 = arith.subf %26, %29 : vector<8x64xf32>
    %31 = math.exp %30 : vector<8x64xf32>
    %cst_11 = arith.constant dense<0.000000e+00> : vector<64xf32>
    %32 = vector.multi_reduction <add>, %31, %cst_11 [0] : vector<8x64xf32> to vector<64xf32>
    %33 = vector.shape_cast %32 : vector<64xf32> to vector<1x64xf32>
    %34 = arith.mulf %31, %25 : vector<8x64xf32>
    %cst_12 = arith.constant dense<0.000000e+00> : vector<64xf32>
    %35 = vector.multi_reduction <add>, %34, %cst_12 [0] : vector<8x64xf32> to vector<64xf32>
    %36 = vector.shape_cast %35 : vector<64xf32> to vector<1x64xf32>
    %37 = arith.divf %36, %33 : vector<1x64xf32>
    %c0_13 = arith.constant 0 : index
    %c0_14 = arith.constant 0 : index
    %38 = vector.load %arg2[%c0_13, %c0_14] : memref<1x64xf32, #tpu.memory_space<vmem>>, vector<1x64xf32>
    tpu.vector_store %arg2[%c0_13, %c0_14], %37 {strides = array<i32>} : memref<1x64xf32, #tpu.memory_space<vmem>>, vector<1x64xf32>,
    return
  }
}

</mosaic_0001>

<llo_original>
// kernel: _mha_forward.1
$region0: #{_mha_forward.1}
  #allocation0 [shape = 'u32[]', space=smem, size = 0x4, offset = 0x4, fixed_abs, tag = 'smem constant byte address 0x4 - core index']
  #allocation1 [shape = 'u32[72,128]{1,0:T(1,128)}', space=vmem, size = 0x9000, scoped, tag = 'internal scratch']
  %s0 = inlined_call_operand.vmem [shape: f32[6], index: 0, kind: input, shape index: {}]
  %s1 = inlined_call_operand.vmem [shape: f32[3,8,64], index: 1, kind: input, shape index: {}]
  %s2 = inlined_call_operand.vmem [shape: f32[1,64], index: 2, kind: output, shape index: {}]
  %s3 = sld [smem:[#allocation0]]
  $region22: #{_mha_forward.1} parent=0
    _
  %s5 = ssub.s32 1, %s3
  %s6 = scalar_select 0, %s5, %s3
  $region1: #{_mha_forward.1} parent=0
    #allocation2 [shape = 'u8[512]{0}', space=smem, size = 0x200, scoped, tag = 'input window, operand 0, single buffered']
    #allocation3 [shape = 's32[1]{0}', space=sflag, size = 0x4, scoped, tag = 'scoped memory for _mha_forward.1']
    %7 = vsyncpa [#allocation3], 0
    // Predicated region
    $region2: #{_mha_forward.1} parent=1 // pred_check
      _
    $region3: #{_mha_forward.1} parent=1 // pred_check_branch
      %9 = sbr.rel (0) target = $region5
    $region4: #{_mha_forward.1} parent=1 // pred_region
      %11 = vsyncadd [#allocation3], 0
      %s13 = sshll.u32 %s0, 4
      %s14 = int_to_ptr.vmem [resolvable:$true] %s13
      %16 = dma.vmem_to_smem %s14, 16, [#allocation2], [#allocation3]
    $region5: #{_mha_forward.1} parent=1 // pred_fallthru
      _
    // Predicated region
    $region6: #{_mha_forward.1} parent=1 // pred_check
      _
    $region7: #{_mha_forward.1} parent=1 // pred_check_branch
      %18 = sbr.rel (0) target = $region9
    $region8: #{_mha_forward.1} parent=1 // pred_region
      _
    $region9: #{_mha_forward.1} parent=1 // pred_fallthru
      _
    // Predicated region
    $region10: #{_mha_forward.1} parent=1 // pred_check
      _
    $region11: #{_mha_forward.1} parent=1 // pred_check_branch
      %20 = sbr.rel (0) target = $region13
    $region12: #{_mha_forward.1} parent=1 // pred_region
      %22 = dma.done [#allocation3], 16
    $region13: #{_mha_forward.1} parent=1 // pred_fallthru
      _
    %23 = sfence
    %s24 = sld [smem:[#allocation2]]
    %s25 = sld [smem:[#allocation2 + $0x1]]
    %s26 = sld [smem:[#allocation2 + $0x2]]
    %s27 = sld [smem:[#allocation2 + $0x3]]
    %s28 = sld [smem:[#allocation2 + $0x4]]
    %s29 = sld [smem:[#allocation2 + $0x5]]
    %v30 = vld [vmem:[%s1] sm:$0xff]
    %s31 = scalar_lea.vmem %s1, 8
    %v32 = vld [vmem:[%s31] sm:$0xff]
    %s33 = scalar_lea.vmem %s1, 16
    %v34 = vld [vmem:[%s33] sm:$0xff]
    %v35 = vstv %s24
    %v36 = vmul.f32 %v30, %v35
    %v37 = vstv %s25
    %v38 = vadd.f32 %v36, %v37
    %v39 = vstv %s26
    %v40 = vmul.f32 %v32, %v39
    %v41 = vstv %s27
    %v42 = vadd.f32 %v40, %v41
    %v43 = vstv %s28
    %v44 = vmul.f32 %v34, %v43
    %v45 = vstv %s29
    %v46 = vadd.f32 %v44, %v45
    %v47 = vmul.f32 %v38, %v42
    %vm48 = vcmask 523264
    %v49 = vsel %vm48, %v47, -inf
    %v50 = vrot.slane %v49, 4
    %v51 = vmax.f32 %v49, %v50
    %v52 = vrot.slane %v51, 2
    %v53 = vmax.f32 %v51, %v52
    %v54 = vrot.slane %v53, 1
    %v55 = vmax.f32 %v53, %v54
    %v56 = vsub.f32 %v47, %v55
    %v57 = vmul.f32 %v56, 1.442695
    %v58 = vpow.pop %v57
    %v59 = vsel %vm48, %v58, 0.0
    %v60 = vrot.slane %v59, 4
    %v61 = vadd.f32 %v59, %v60
    %v62 = vrot.slane %v61, 2
    %v63 = vadd.f32 %v61, %v62
    %v64 = vrot.slane %v63, 1
    %v65 = vadd.f32 %v63, %v64
    %v66 = vmul.f32 %v58, %v46
    %v67 = vsel %vm48, %v66, 0.0
    %v68 = vrot.slane %v67, 4
    %v69 = vadd.f32 %v67, %v68
    %v70 = vrot.slane %v69, 2
    %v71 = vadd.f32 %v69, %v70
    %v72 = vrot.slane %v71, 1
    %v73 = vadd.f32 %v71, %v72
    %v74 = vrcp.pop %v65
    %v75 = vmul.f32 %v65, %v74
    %v76 = vsub.f32 1.0, %v75
    %v77 = vmul.f32 %v74, %v76
    %v78 = vadd.f32 %v74, %v77
    %vm79 = vweird.f32 %v65
    %vm80 = vweird.f32 %v74
    %vm81 = vmor %vm79, %vm80
    %v82 = vsel %vm81, %v74, %v78
    %v83 = vand.u32 2147483647, %v65
    %vm84 = vcmp.eq.f32.partialorder %v83, 8.507059e+37
    %v85 = vand.u32 %v65, 2147483648
    %v86 = vor.u32 1.1754944e-38, %v85
    %v87 = vsel %vm84, %v86, %v82
    %v88 = vmul.f32 %v73, %v87
    %vm89 = vcmask 516096
    %90 = vst.msk [vmem:[%s2] sm:$0x1] %vm89, %v88
    // Predicated region
    $region14: #{_mha_forward.1} parent=1 // pred_check
      _
    $region15: #{_mha_forward.1} parent=1 // pred_check_branch
      %92 = sbr.rel (0) target = $region17
    $region16: #{_mha_forward.1} parent=1 // pred_region
      _
    $region17: #{_mha_forward.1} parent=1 // pred_fallthru
      _
    // Predicated region
    $region18: #{_mha_forward.1} parent=1 // pred_check
      _
    $region19: #{_mha_forward.1} parent=1 // pred_check_branch
      %94 = sbr.rel (0) target = $region21
    $region20: #{_mha_forward.1} parent=1 // pred_region
      _
    $region21: #{_mha_forward.1} parent=1 // pred_fallthru
      _
    %95 = vsyncpa [#allocation3], 1

</llo_original>
